<compile_context>
chip_gen: v7x
topology: tpu7x:2x2x1
jax: 0.10.0
libtpu: 0.0.40
codegen_flags: <defaults>
</compile_context>

<pallas_src>
import functools

import jax
import jax.numpy as jnp
from jax import lax
from jax.experimental import pallas as pl
from jax.experimental.pallas import tpu as pltpu


def _round_up(n, m):
    return ((n + m - 1) // m) * m


def _actor_critic_kernel(x_ref, w1_ref, b1_ref, w2_ref, b2_ref, out_ref, *, num_actions):
    """One batch tile: fused actor+critic MLP, packed lane-dense output.

    x_ref   : (Bt, D)   f32 input (cast to compute dtype in-kernel)
    w1_ref  : (D, 2H)   compute dtype   [w1_actor | w1_critic]
    b1_ref  : (1, 2H)   f32             [b1_actor | b1_critic]
    w2_ref  : (2H, OW)  compute dtype   block-diag: rows :H -> cols :A (actor),
                                        rows H: -> col A (critic), rest zero
    b2_ref  : (1, OW)   f32             [b2_actor | b2_critic | 0...]
    out_ref : (Bt, OW)  out dtype       [softmax probs | value | 0...]
    """
    # In-kernel cast (hides under MXU/DMA; avoids a separate XLA cast pass over x in HBM).
    x = x_ref[...].astype(w1_ref.dtype)

    # Fused first layer (actor || critic) -> ReLU.
    h = jnp.dot(x, w1_ref[...], preferred_element_type=jnp.float32) + b1_ref[...]
    h = jnp.maximum(h, 0.0)                                        # (Bt, 2H) f32

    # Fused block-diagonal second layer -> [actor logits | critic value | 0 pad].
    z = jnp.dot(h.astype(w2_ref.dtype), w2_ref[...],
                preferred_element_type=jnp.float32) + b2_ref[...]  # (Bt, OW) f32

    col = lax.broadcasted_iota(jnp.int32, z.shape, 1)
    is_logit = col < num_actions
    is_value = col == num_actions

    # Masked softmax over the first `num_actions` lanes, exact normalization in f32.
    logits = jnp.where(is_logit, z, -jnp.inf)
    m = jnp.max(logits, axis=-1, keepdims=True)
    e = jnp.exp(logits - m)                                        # exactly 0 in non-logit lanes
    denom = jnp.sum(e, axis=-1, keepdims=True)
    probs = e / denom                                              # rows sum to 1 (f32 exact)

    # Packed output: probs in lanes [0, A), critic value in lane A, zeros elsewhere.
    out_ref[...] = (probs + jnp.where(is_value, z, 0.0)).astype(out_ref.dtype)


def init_params(key, input_size, output_size, hidden=128):
    """PyTorch-Linear-style init U(-1/sqrt(fan_in), 1/sqrt(fan_in)).
    Weights stored as (in, out) so the kernel does x @ W."""
    ks = jax.random.split(key, 8)

    def lin(kw, kb, fan_in, fan_out):
        bound = 1.0 / jnp.sqrt(fan_in)
        w = jax.random.uniform(kw, (fan_in, fan_out), jnp.float32, -bound, bound)
        b = jax.random.uniform(kb, (1, fan_out), jnp.float32, -bound, bound)
        return w, b

    w1a, b1a = lin(ks[0], ks[1], input_size, hidden)
    w2a, b2a = lin(ks[2], ks[3], hidden, output_size)
    w1c, b1c = lin(ks[4], ks[5], input_size, hidden)
    w2c, b2c = lin(ks[6], ks[7], hidden, 1)
    return (w1a, b1a, w2a, b2a, w1c, b1c, w2c, b2c)


def pack_params(params, compute_dtype=jnp.bfloat16):
    """Fuse actor+critic weights into two matmuls (done once, outside the kernel)."""
    (w1a, b1a, w2a, b2a, w1c, b1c, w2c, b2c) = params
    D, H = w1a.shape
    A = w2a.shape[1]
    out_w = max(128, _round_up(A + 1, 128))                        # lane-dense output width

    w1 = jnp.concatenate([w1a, w1c], axis=1).astype(compute_dtype)  # (D, 2H)
    b1 = jnp.concatenate([b1a, b1c], axis=1).astype(jnp.float32)    # (1, 2H)

    w2 = jnp.zeros((2 * H, out_w), jnp.float32)                     # block-diagonal fuse
    w2 = w2.at[:H, :A].set(w2a)
    w2 = w2.at[H:, A].set(w2c[:, 0])
    w2 = w2.astype(compute_dtype)

    b2 = jnp.zeros((1, out_w), jnp.float32)
    b2 = b2.at[:, :A].set(b2a)
    b2 = b2.at[:, A].set(b2c[0, 0])

    return dict(w1=w1, b1=b1, w2=w2, b2=b2, num_actions=A, out_w=out_w,
                out_dtype=jnp.dtype(compute_dtype))


def _num_tensorcores():
    """Grid blocks = TensorCores per chip: 2 on v7x (dual-TC), else 1."""
    try:
        kind = jax.devices()[0].device_kind.lower()
        if "v7" in kind:
            return 2
    except Exception:
        pass
    return 1


def actor_critic_forward(x, packed, num_blocks=None, max_block_b=1024):
    """x: (D,) single state or (B, D) batch of states (float).
    Returns (a_prob (B, A) f32, v (B, 1) f32); B=1 for a single state (matches unsqueeze(0))."""
    w1, b1, w2, b2 = packed["w1"], packed["b1"], packed["w2"], packed["b2"]
    A, out_w, out_dtype = packed["num_actions"], packed["out_w"], packed["out_dtype"]
    compute_dtype = w1.dtype

    x2d = jnp.atleast_2d(jnp.asarray(x, dtype=jnp.float32))        # (B, D) stays f32 in HBM
    B, D = x2d.shape

    # One batch block per TensorCore (grid-step overhead dominates at this problem size).
    if num_blocks is None:
        num_blocks = _num_tensorcores()
    sub = 16 if compute_dtype == jnp.bfloat16 else 8               # compute-dtype sublane pack
    bt = _round_up(pl.cdiv(B, num_blocks), sub)
    bt = min(bt, _round_up(max_block_b, sub))                      # VMEM safety cap
    nblk = pl.cdiv(B, bt)
    Bp = nblk * bt
    if Bp != B:
        x2d = jnp.pad(x2d, ((0, Bp - B), (0, 0)))

    kernel = functools.partial(_actor_critic_kernel, num_actions=A)
    out = pl.pallas_call(
        kernel,
        out_shape=jax.ShapeDtypeStruct((Bp, out_w), out_dtype),
        grid=(nblk,),
        in_specs=[
            pl.BlockSpec((bt, D), lambda i: (i, 0)),               # x: tiled over batch
            pl.BlockSpec(w1.shape, lambda i: (0, 0)),              # fused weights resident
            pl.BlockSpec(b1.shape, lambda i: (0, 0)),
            pl.BlockSpec(w2.shape, lambda i: (0, 0)),
            pl.BlockSpec(b2.shape, lambda i: (0, 0)),
        ],
        out_specs=pl.BlockSpec((bt, out_w), lambda i: (i, 0)),
        compiler_params=pltpu.CompilerParams(
            dimension_semantics=("parallel",)),                    # v7x: one block per TC
    )(x2d, w1, b1, w2, b2)

    a_prob = out[:B, :A].astype(jnp.float32)
    v = out[:B, A:A + 1].astype(jnp.float32)
    return a_prob, v


def _reference_forward(x, params):
    """Pure-JAX f32 reference (PyTorch semantics)."""
    (w1a, b1a, w2a, b2a, w1c, b1c, w2c, b2c) = params
    x2d = jnp.atleast_2d(jnp.asarray(x, dtype=jnp.float32))
    logits = jnp.maximum(x2d @ w1a + b1a, 0.0) @ w2a + b2a
    prob = jax.nn.softmax(logits, axis=1)
    v = jnp.maximum(x2d @ w1c + b1c, 0.0) @ w2c + b2c
    return prob, v


if __name__ == "__main__":
    input_size = 16      # state_size
    output_size = 4      # action_size

    key = jax.random.PRNGKey(0)
    k_param, k_x = jax.random.split(key)
    params = init_params(k_param, input_size, output_size)

    # ---- batched path: bf16 matmul operands + bf16 packed output, f32 accumulation ----
    batch = 256
    xb = jax.random.normal(k_x, (batch, input_size), dtype=jnp.float32)
    packed_bf16 = pack_params(params, compute_dtype=jnp.bfloat16)
    probs_b, v_b = actor_critic_forward(xb, packed_bf16)
    probs_b = jax.block_until_ready(probs_b)
    v_b = jax.block_until_ready(v_b)

    ref_p, ref_v = _reference_forward(xb, params)
    assert probs_b.shape == (batch, output_size) and v_b.shape == (batch, 1)
    # bf16 output rounding limits row-sum precision to ~1e-3; softmax itself is exact in f32.
    assert jnp.allclose(jnp.sum(probs_b, axis=1), 1.0, atol=1e-2), "softmax rows must sum to 1"
    assert jnp.allclose(probs_b, ref_p, atol=5e-2), "actor softmax mismatch (bf16 path)"
    assert jnp.allclose(v_b, ref_v, atol=5e-2), "critic value mismatch (bf16 path)"

    # ---- single-state path (module semantics: unsqueeze(0)), f32 compute, strict check ----
    packed_f32 = pack_params(params, compute_dtype=jnp.float32)
    x1 = xb[0]
    p1, v1 = actor_critic_forward(x1, packed_f32)
    p1 = jax.block_until_ready(p1)
    v1 = jax.block_until_ready(v1)

    rp1, rv1 = _reference_forward(x1, params)
    assert p1.shape == (1, output_size) and v1.shape == (1, 1)
    assert jnp.allclose(p1, rp1, atol=1e-3), "actor softmax mismatch (f32 path)"
    assert jnp.allclose(v1, rv1, atol=1e-3), "critic value mismatch (f32 path)"
    assert jnp.allclose(jnp.sum(p1), 1.0, atol=1e-3), "softmax row must sum to 1 (f32 path)"

    print("KERNEL_OK")
</pallas_src>

<mosaic_0001>
module attributes {stable_mosaic.version = 11 : i64} {
  func.func @_actor_critic_kernel(%arg0: i32, %arg1: memref<256x16xf32, #tpu.memory_space<vmem>>, %arg2: memref<16x256xbf16, #tpu.memory_space<vmem>>, %arg3: memref<1x256xf32, #tpu.memory_space<vmem>>, %arg4: memref<256x128xbf16, #tpu.memory_space<vmem>>, %arg5: memref<1x128xf32, #tpu.memory_space<vmem>>, %arg6: memref<256x128xbf16, #tpu.memory_space<vmem>>) attributes {dimension_semantics = [#tpu.dimension_semantics<parallel>], iteration_bounds = array<i64: 1>, scalar_prefetch = 0 : i64, scratch_operands = 0 : i64, tpu.core_type = #tpu.core_type<tc>, window_params = [{transform_indices = @transform_0, window_bounds = array<i64: 256, 16>}, {pipeline_mode = #tpu.pipeline_mode<synchronous>, transform_indices = @transform_1, window_bounds = array<i64: 16, 256>}, {pipeline_mode = #tpu.pipeline_mode<synchronous>, transform_indices = @transform_2, window_bounds = array<i64: 1, 256>}, {pipeline_mode = #tpu.pipeline_mode<synchronous>, transform_indices = @transform_3, window_bounds = array<i64: 256, 128>}, {pipeline_mode = #tpu.pipeline_mode<synchronous>, transform_indices = @transform_4, window_bounds = array<i64: 1, 128>}, {transform_indices = @transform_5, window_bounds = array<i64: 256, 128>}]} {
    %c0 = arith.constant 0 : index
    %c0_0 = arith.constant 0 : index
    %0 = vector.load %arg1[%c0, %c0_0] : memref<256x16xf32, #tpu.memory_space<vmem>>, vector<256x16xf32>
    %1 = arith.truncf %0 : vector<256x16xf32> to vector<256x16xbf16>
    %c0_1 = arith.constant 0 : index
    %c0_2 = arith.constant 0 : index
    %2 = vector.load %arg2[%c0_1, %c0_2] : memref<16x256xbf16, #tpu.memory_space<vmem>>, vector<16x256xbf16>
    %cst = arith.constant dense<0.000000e+00> : vector<256x256xf32>
    %3 = tpu.matmul %1, %2, %cst {dimension_numbers = #tpu.dot_dimension_numbers<[1], [0], [0], [1], [0, 0, 1, 1], [], []>} : vector<256x16xbf16>, vector<16x256xbf16>, vector<256x256xf32> -> vector<256x256xf32>
    %c0_3 = arith.constant 0 : index
    %c0_4 = arith.constant 0 : index
    %4 = vector.load %arg3[%c0_3, %c0_4] : memref<1x256xf32, #tpu.memory_space<vmem>>, vector<1x256xf32>
    %5 = vector.broadcast %4 : vector<1x256xf32> to vector<256x256xf32>
    %6 = arith.addf %3, %5 : vector<256x256xf32>
    %cst_5 = arith.constant 0.000000e+00 : f32
    %7 = vector.broadcast %cst_5 : f32 to vector<256x256xf32>
    %8 = arith.maximumf %6, %7 : vector<256x256xf32>
    %9 = arith.truncf %8 : vector<256x256xf32> to vector<256x256xbf16>
    %c0_6 = arith.constant 0 : index
    %c0_7 = arith.constant 0 : index
    %10 = vector.load %arg4[%c0_6, %c0_7] : memref<256x128xbf16, #tpu.memory_space<vmem>>, vector<256x128xbf16>
    %cst_8 = arith.constant dense<0.000000e+00> : vector<256x128xf32>
    %11 = tpu.matmul %9, %10, %cst_8 {dimension_numbers = #tpu.dot_dimension_numbers<[1], [0], [0], [1], [0, 0, 1, 1], [], []>} : vector<256x256xbf16>, vector<256x128xbf16>, vector<256x128xf32> -> vector<256x128xf32>
    %c0_9 = arith.constant 0 : index
    %c0_10 = arith.constant 0 : index
    %12 = vector.load %arg5[%c0_9, %c0_10] : memref<1x128xf32, #tpu.memory_space<vmem>>, vector<1x128xf32>
    %13 = vector.broadcast %12 : vector<1x128xf32> to vector<256x128xf32>
    %14 = arith.addf %11, %13 : vector<256x128xf32>
    %15 = tpu.iota {dimensions = array<i32: 1>} : vector<256x128xi32>
    %c4_i32 = arith.constant 4 : i32
    %16 = vector.broadcast %c4_i32 : i32 to vector<256x128xi32>
    %17 = arith.cmpi slt, %15, %16 : vector<256x128xi32>
    %c4_i32_11 = arith.constant 4 : i32
    %18 = vector.broadcast %c4_i32_11 : i32 to vector<256x128xi32>
    %19 = arith.cmpi eq, %15, %18 : vector<256x128xi32>
    %cst_12 = arith.constant 0xFF800000 : f32
    %20 = vector.broadcast %cst_12 : f32 to vector<256x128xf32>
    %21 = arith.select %17, %14, %20 : vector<256x128xi1>, vector<256x128xf32>
    %cst_13 = arith.constant dense<0xFF800000> : vector<256xf32>
    %22 = vector.multi_reduction <maximumf>, %21, %cst_13 [1] : vector<256x128xf32> to vector<256xf32>
    %23 = vector.shape_cast %22 : vector<256xf32> to vector<256x1xf32>
    %24 = vector.broadcast %23 : vector<256x1xf32> to vector<256x128xf32>
    %25 = arith.subf %21, %24 : vector<256x128xf32>
    %26 = math.exp %25 : vector<256x128xf32>
    %cst_14 = arith.constant dense<0.000000e+00> : vector<256xf32>
    %27 = vector.multi_reduction <add>, %26, %cst_14 [1] : vector<256x128xf32> to vector<256xf32>
    %28 = vector.shape_cast %27 : vector<256xf32> to vector<256x1xf32>
    %29 = vector.broadcast %28 : vector<256x1xf32> to vector<256x128xf32>
    %30 = arith.divf %26, %29 : vector<256x128xf32>
    %cst_15 = arith.constant 0.000000e+00 : f32
    %31 = vector.broadcast %cst_15 : f32 to vector<256x128xf32>
    %32 = arith.select %19, %14, %31 : vector<256x128xi1>, vector<256x128xf32>
    %33 = arith.addf %30, %32 : vector<256x128xf32>
    %34 = arith.truncf %33 : vector<256x128xf32> to vector<256x128xbf16>
    %c0_16 = arith.constant 0 : index
    %c0_17 = arith.constant 0 : index
    %35 = vector.load %arg6[%c0_16, %c0_17] : memref<256x128xbf16, #tpu.memory_space<vmem>>, vector<256x128xbf16>
    tpu.vector_store %arg6[%c0_16, %c0_17], %34 {strides = array<i32>} : memref<256x128xbf16, #tpu.memory_space<vmem>>, vector<256x128xbf16>,
    return
  }
  func.func @transform_0(%arg0: i32) -> (i32, i32) {
    %c0_i32 = arith.constant 0 : i32
    %c0_i32_0 = arith.constant 0 : i32
    return %arg0, %c0_i32 : i32, i32
  }
  func.func @transform_1(%arg0: i32) -> (i32, i32) {
    %c0_i32 = arith.constant 0 : i32
    %c0_i32_0 = arith.constant 0 : i32
    %c0_i32_1 = arith.constant 0 : i32
    return %c0_i32, %c0_i32_0 : i32, i32
  }
  func.func @transform_2(%arg0: i32) -> (i32, i32) {
    %c0_i32 = arith.constant 0 : i32
    %c0_i32_0 = arith.constant 0 : i32
    %c0_i32_1 = arith.constant 0 : i32
    return %c0_i32, %c0_i32_0 : i32, i32
  }
  func.func @transform_3(%arg0: i32) -> (i32, i32) {
    %c0_i32 = arith.constant 0 : i32
    %c0_i32_0 = arith.constant 0 : i32
    %c0_i32_1 = arith.constant 0 : i32
    return %c0_i32, %c0_i32_0 : i32, i32
  }
  func.func @transform_4(%arg0: i32) -> (i32, i32) {
    %c0_i32 = arith.constant 0 : i32
    %c0_i32_0 = arith.constant 0 : i32
    %c0_i32_1 = arith.constant 0 : i32
    return %c0_i32, %c0_i32_0 : i32, i32
  }
  func.func @transform_5(%arg0: i32) -> (i32, i32) {
    %c0_i32 = arith.constant 0 : i32
    %c0_i32_0 = arith.constant 0 : i32
    return %arg0, %c0_i32 : i32, i32
  }
}

</mosaic_0001>

<llo_original>
// kernel: tpu_custom_call.1
$region0: #{tpu_custom_call.1}
  #allocation0 [shape = 'u32[]', space=smem, size = 0x4, offset = 0x4, fixed_abs, tag = 'smem constant byte address 0x4 - core index']
  #allocation1 [shape = 'u32[144,128]{1,0:T(1,128)}', space=vmem, size = 0x12000, scoped, tag = 'internal scratch']
  %s0 = inlined_call_operand.vmem [shape: f32[256,16], index: 0, kind: input, shape index: {}]
  %s1 = inlined_call_operand.vmem [shape: bf16[16,256], index: 1, kind: input, shape index: {}]
  %s2 = inlined_call_operand.vmem [shape: f32[1,256], index: 2, kind: input, shape index: {}]
  %s3 = inlined_call_operand.vmem [shape: bf16[256,128], index: 3, kind: input, shape index: {}]
  %s4 = inlined_call_operand.vmem [shape: f32[1,128], index: 4, kind: input, shape index: {}]
  %s5 = inlined_call_operand.hbm [shape: bf16[256,128], index: 5, kind: output, shape index: {}]
  %s6 = sld [smem:[#allocation0]]
  $region30: #{tpu_custom_call.1} parent=0
    _
  %s8 = ssub.s32 1, %s6
  %s9 = scalar_select 0, %s8, %s6
  $region1: #{tpu_custom_call.1} parent=0
    #allocation2 [shape = 'u8[65536]{0}', space=vmem, size = 0x10000, scoped, tag = 'output window, operand 0, single buffered']
    #allocation3 [shape = 's32[1]{0}', space=sflag, size = 0x4, scoped, tag = 'scoped memory for tpu_custom_call.1']
    %10 = vsyncpa [#allocation3], 0
    // Predicated region
    $region2: #{tpu_custom_call.1} parent=1 // pred_check
      _
    $region3: #{tpu_custom_call.1} parent=1 // pred_check_branch
      %12 = sbr.rel (0) target = $region5
    $region4: #{tpu_custom_call.1} parent=1 // pred_region
      _
    $region5: #{tpu_custom_call.1} parent=1 // pred_fallthru
      _
    // Predicated region
    $region6: #{tpu_custom_call.1} parent=1 // pred_check
      _
    $region7: #{tpu_custom_call.1} parent=1 // pred_check_branch
      %14 = sbr.rel (0) target = $region9
    $region8: #{tpu_custom_call.1} parent=1 // pred_region
      _
    $region9: #{tpu_custom_call.1} parent=1 // pred_fallthru
      _
    // Predicated region
    $region10: #{tpu_custom_call.1} parent=1 // pred_check
      _
    $region11: #{tpu_custom_call.1} parent=1 // pred_check_branch
      %16 = sbr.rel (0) target = $region13
    $region12: #{tpu_custom_call.1} parent=1 // pred_region
      _
    $region13: #{tpu_custom_call.1} parent=1 // pred_fallthru
      _
    // Predicated region
    $region14: #{tpu_custom_call.1} parent=1 // pred_check
      _
    $region15: #{tpu_custom_call.1} parent=1 // pred_check_branch
      %18 = sbr.rel (0) target = $region17
    $region16: #{tpu_custom_call.1} parent=1 // pred_region
      _
    $region17: #{tpu_custom_call.1} parent=1 // pred_fallthru
      _
    // Predicated region
    $region18: #{tpu_custom_call.1} parent=1 // pred_check
      _
    $region19: #{tpu_custom_call.1} parent=1 // pred_check_branch
      %20 = sbr.rel (0) target = $region21
    $region20: #{tpu_custom_call.1} parent=1 // pred_region
      _
    $region21: #{tpu_custom_call.1} parent=1 // pred_fallthru
      _
    %v22 = vld [vmem:[%s0] sm:$0xff]
    %v23 = vld [vmem:[%s0 + $0x8] sm:$0xff]
    %v24 = vld [vmem:[%s0 + $0x10] sm:$0xff]
    %v25 = vld [vmem:[%s0 + $0x18] sm:$0xff]
    %v26 = vld [vmem:[%s0 + $0x20] sm:$0xff]
    %v27 = vld [vmem:[%s0 + $0x28] sm:$0xff]
    %v28 = vld [vmem:[%s0 + $0x30] sm:$0xff]
    %v29 = vld [vmem:[%s0 + $0x38] sm:$0xff]
    %v30 = vld [vmem:[%s0 + $0x40] sm:$0xff]
    %v31 = vld [vmem:[%s0 + $0x48] sm:$0xff]
    %v32 = vld [vmem:[%s0 + $0x50] sm:$0xff]
    %v33 = vld [vmem:[%s0 + $0x58] sm:$0xff]
    %v34 = vld [vmem:[%s0 + $0x60] sm:$0xff]
    %v35 = vld [vmem:[%s0 + $0x68] sm:$0xff]
    %v36 = vld [vmem:[%s0 + $0x70] sm:$0xff]
    %v37 = vld [vmem:[%s0 + $0x78] sm:$0xff]
    %v38 = vld [vmem:[%s0 + $0x80] sm:$0xff]
    %v39 = vld [vmem:[%s0 + $0x88] sm:$0xff]
    %v40 = vld [vmem:[%s0 + $0x90] sm:$0xff]
    %v41 = vld [vmem:[%s0 + $0x98] sm:$0xff]
    %v42 = vld [vmem:[%s0 + $0xa0] sm:$0xff]
    %v43 = vld [vmem:[%s0 + $0xa8] sm:$0xff]
    %v44 = vld [vmem:[%s0 + $0xb0] sm:$0xff]
    %v45 = vld [vmem:[%s0 + $0xb8] sm:$0xff]
    %v46 = vld [vmem:[%s0 + $0xc0] sm:$0xff]
    %v47 = vld [vmem:[%s0 + $0xc8] sm:$0xff]
    %v48 = vld [vmem:[%s0 + $0xd0] sm:$0xff]
    %v49 = vld [vmem:[%s0 + $0xd8] sm:$0xff]
    %v50 = vld [vmem:[%s0 + $0xe0] sm:$0xff]
    %v51 = vld [vmem:[%s0 + $0xe8] sm:$0xff]
    %v52 = vld [vmem:[%s0 + $0xf0] sm:$0xff]
    %v53 = vld [vmem:[%s0 + $0xf8] sm:$0xff]
    %v54 = vpack.c.bf16 %v23, %v22
    %v55 = vpack.c.bf16 %v25, %v24
    %v56 = vpack.c.bf16 %v27, %v26
    %v57 = vpack.c.bf16 %v29, %v28
    %v58 = vpack.c.bf16 %v31, %v30
    %v59 = vpack.c.bf16 %v33, %v32
    %v60 = vpack.c.bf16 %v35, %v34
    %v61 = vpack.c.bf16 %v37, %v36
    %v62 = vpack.c.bf16 %v39, %v38
    %v63 = vpack.c.bf16 %v41, %v40
    %v64 = vpack.c.bf16 %v43, %v42
    %v65 = vpack.c.bf16 %v45, %v44
    %v66 = vpack.c.bf16 %v47, %v46
    %v67 = vpack.c.bf16 %v49, %v48
    %v68 = vpack.c.bf16 %v51, %v50
    %v69 = vpack.c.bf16 %v53, %v52
    %v70 = vld [vmem:[%s1] sm:$0xff]
    %v71 = vld [vmem:[%s1 + $0x8] sm:$0xff]
    %v72 = vld [vmem:[%s2] sm:$0x3]
    %v74 = vlaneseq
    %v75 = vshrl.u32 %v74, 7
    %v76 = vsub.s32 0, %v75
    %v77 = vrot.slane %v72, %v76
    %v78 = vlaneseq
    %v79 = vshrl.u32 %v78, 7
    %v80 = vsub.s32 1, %v79
    %v81 = vrot.slane %v72, %v80
    %v86 = vunpack.c.l.b16 %v70
    %v87 = vunpack.c.h.b16 %v70
    %v88 = vunpack.c.l.b16 %v71
    %v89 = vunpack.c.h.b16 %v71
    %v90 = vpack.c.b16 %v88, %v86
    %v91 = vpack.c.b16 %v89, %v87
    %vm94 = vcmask 130048
    %v96 = vsel %vm94, %v54, 0
    %v99 = vsel %vm94, %v55, 0
    %v102 = vsel %vm94, %v56, 0
    %v105 = vsel %vm94, %v57, 0
    %v108 = vsel %vm94, %v58, 0
    %v111 = vsel %vm94, %v59, 0
    %v114 = vsel %vm94, %v60, 0
    %v117 = vsel %vm94, %v61, 0
    %v120 = vsel %vm94, %v62, 0
    %v123 = vsel %vm94, %v63, 0
    %v126 = vsel %vm94, %v64, 0
    %v129 = vsel %vm94, %v65, 0
    %v132 = vsel %vm94, %v66, 0
    %v135 = vsel %vm94, %v67, 0
    %v138 = vsel %vm94, %v68, 0
    %v141 = vsel %vm94, %v69, 0
    %143 = vmatprep.subr.bf16.mxu0 %v91
    %144 = vmatpush1.bf16.msra.mxu0 %v90
    %145 = vmatprep.subr.bf16.mxu0 0
    %146 = vmatpush1.bf16.msra.mxu0 0
    %147 = vmatprep.subr.bf16.mxu0 0
    %148 = vmatpush1.bf16.msra.mxu0 0
    %149 = vmatprep.subr.bf16.mxu0 0
    %150 = vmatpush1.bf16.msra.mxu0 0
    %151 = vmatprep.subr.bf16.mxu0 0
    %152 = vmatpush1.bf16.msra.mxu0 0
    %153 = vmatprep.subr.bf16.mxu0 0
    %154 = vmatpush1.bf16.msra.mxu0 0
    %155 = vmatprep.subr.bf16.mxu0 0
    %156 = vmatpush1.bf16.msra.mxu0 0
    %157 = vmatprep.subr.bf16.mxu0 0
    %158 = vmatpush1.bf16.msra.mxu0 0
    %159 = vmatprep.subr.bf16.mxu0 0
    %160 = vmatpush1.bf16.msra.mxu0 0
    %161 = vmatprep.subr.bf16.mxu0 0
    %162 = vmatpush1.bf16.msra.mxu0 0
    %163 = vmatprep.subr.bf16.mxu0 0
    %164 = vmatpush1.bf16.msra.mxu0 0
    %165 = vmatprep.subr.bf16.mxu0 0
    %166 = vmatpush1.bf16.msra.mxu0 0
    %167 = vmatprep.subr.bf16.mxu0 0
    %168 = vmatpush1.bf16.msra.mxu0 0
    %169 = vmatprep.subr.bf16.mxu0 0
    %170 = vmatpush1.bf16.msra.mxu0 0
    %171 = vmatprep.subr.bf16.mxu0 0
    %172 = vmatpush1.bf16.msra.mxu0 0
    %173 = vmatprep.subr.bf16.mxu0 0
    %174 = vmatpush1.bf16.msra.mxu0 0
    %175 = vmatprep.mubr.bf16.mxu0 0
    %176 = vmatmul.mubr.bf16.gmra.mrb[0].mxu0 %v96
    %v177 = vpop.f32.mrb[0].mxu0
    %v178 = vadd.f32 %v77, %v177
    %v179 = vpop.f32.mrb[0].mxu0
    %v180 = vadd.f32 %v81, %v179
    %v181 = vpop.f32.mrb[0].mxu0
    %v182 = vadd.f32 %v77, %v181
    %v183 = vpop.f32.mrb[0].mxu0
    %v184 = vadd.f32 %v81, %v183
    %185 = vmatprep.mubr.bf16.mxu0 0
    %186 = vmatmul.mubr.bf16.gmra.mrb[0].mxu0 %v99
    %v187 = vpop.f32.mrb[0].mxu0
    %v188 = vadd.f32 %v77, %v187
    %v189 = vpop.f32.mrb[0].mxu0
    %v190 = vadd.f32 %v81, %v189
    %v191 = vpop.f32.mrb[0].mxu0
    %v192 = vadd.f32 %v77, %v191
    %v193 = vpop.f32.mrb[0].mxu0
    %v194 = vadd.f32 %v81, %v193
    %195 = vmatprep.mubr.bf16.mxu0 0
    %196 = vmatmul.mubr.bf16.gmra.mrb[0].mxu0 %v102
    %v197 = vpop.f32.mrb[0].mxu0
    %v198 = vadd.f32 %v77, %v197
    %v199 = vpop.f32.mrb[0].mxu0
    %v200 = vadd.f32 %v81, %v199
    %v201 = vpop.f32.mrb[0].mxu0
    %v202 = vadd.f32 %v77, %v201
    %v203 = vpop.f32.mrb[0].mxu0
    %v204 = vadd.f32 %v81, %v203
    %205 = vmatprep.mubr.bf16.mxu0 0
    %206 = vmatmul.mubr.bf16.gmra.mrb[0].mxu0 %v105
    %v207 = vpop.f32.mrb[0].mxu0
    %v208 = vadd.f32 %v77, %v207
    %v209 = vpop.f32.mrb[0].mxu0
    %v210 = vadd.f32 %v81, %v209
    %v211 = vpop.f32.mrb[0].mxu0
    %v212 = vadd.f32 %v77, %v211
    %v213 = vpop.f32.mrb[0].mxu0
    %v214 = vadd.f32 %v81, %v213
    %215 = vmatprep.mubr.bf16.mxu0 0
    %216 = vmatmul.mubr.bf16.gmra.mrb[0].mxu0 %v108
    %v217 = vpop.f32.mrb[0].mxu0
    %v218 = vadd.f32 %v77, %v217
    %v219 = vpop.f32.mrb[0].mxu0
    %v220 = vadd.f32 %v81, %v219
    %v221 = vpop.f32.mrb[0].mxu0
    %v222 = vadd.f32 %v77, %v221
    %v223 = vpop.f32.mrb[0].mxu0
    %v224 = vadd.f32 %v81, %v223
    %225 = vmatprep.mubr.bf16.mxu0 0
    %226 = vmatmul.mubr.bf16.gmra.mrb[0].mxu0 %v111
    %v227 = vpop.f32.mrb[0].mxu0
    %v228 = vadd.f32 %v77, %v227
    %v229 = vpop.f32.mrb[0].mxu0
    %v230 = vadd.f32 %v81, %v229
    %v231 = vpop.f32.mrb[0].mxu0
    %v232 = vadd.f32 %v77, %v231
    %v233 = vpop.f32.mrb[0].mxu0
    %v234 = vadd.f32 %v81, %v233
    %235 = vmatprep.mubr.bf16.mxu0 0
    %236 = vmatmul.mubr.bf16.gmra.mrb[0].mxu0 %v114
    %v237 = vpop.f32.mrb[0].mxu0
    %v238 = vadd.f32 %v77, %v237
    %v239 = vpop.f32.mrb[0].mxu0
    %v240 = vadd.f32 %v81, %v239
    %v241 = vpop.f32.mrb[0].mxu0
    %v242 = vadd.f32 %v77, %v241
    %v243 = vpop.f32.mrb[0].mxu0
    %v244 = vadd.f32 %v81, %v243
    %245 = vmatprep.mubr.bf16.mxu0 0
    %246 = vmatmul.mubr.bf16.gmra.mrb[0].mxu0 %v117
    %v247 = vpop.f32.mrb[0].mxu0
    %v248 = vadd.f32 %v77, %v247
    %v249 = vpop.f32.mrb[0].mxu0
    %v250 = vadd.f32 %v81, %v249
    %v251 = vpop.f32.mrb[0].mxu0
    %v252 = vadd.f32 %v77, %v251
    %v253 = vpop.f32.mrb[0].mxu0
    %v254 = vadd.f32 %v81, %v253
    %255 = vmatprep.mubr.bf16.mxu0 0
    %256 = vmatmul.mubr.bf16.gmra.mrb[0].mxu0 %v120
    %v257 = vpop.f32.mrb[0].mxu0
    %v258 = vadd.f32 %v77, %v257
    %v259 = vpop.f32.mrb[0].mxu0
    %v260 = vadd.f32 %v81, %v259
    %v261 = vpop.f32.mrb[0].mxu0
    %v262 = vadd.f32 %v77, %v261
    %v263 = vpop.f32.mrb[0].mxu0
    %v264 = vadd.f32 %v81, %v263
    %265 = vmatprep.mubr.bf16.mxu0 0
    %266 = vmatmul.mubr.bf16.gmra.mrb[0].mxu0 %v123
    %v267 = vpop.f32.mrb[0].mxu0
    %v268 = vadd.f32 %v77, %v267
    %v269 = vpop.f32.mrb[0].mxu0
    %v270 = vadd.f32 %v81, %v269
    %v271 = vpop.f32.mrb[0].mxu0
    %v272 = vadd.f32 %v77, %v271
    %v273 = vpop.f32.mrb[0].mxu0
    %v274 = vadd.f32 %v81, %v273
    %275 = vmatprep.mubr.bf16.mxu0 0
    %276 = vmatmul.mubr.bf16.gmra.mrb[0].mxu0 %v126
    %v277 = vpop.f32.mrb[0].mxu0
    %v278 = vadd.f32 %v77, %v277
    %v279 = vpop.f32.mrb[0].mxu0
    %v280 = vadd.f32 %v81, %v279
    %v281 = vpop.f32.mrb[0].mxu0
    %v282 = vadd.f32 %v77, %v281
    %v283 = vpop.f32.mrb[0].mxu0
    %v284 = vadd.f32 %v81, %v283
    %285 = vmatprep.mubr.bf16.mxu0 0
    %286 = vmatmul.mubr.bf16.gmra.mrb[0].mxu0 %v129
    %v287 = vpop.f32.mrb[0].mxu0
    %v288 = vadd.f32 %v77, %v287
    %v289 = vpop.f32.mrb[0].mxu0
    %v290 = vadd.f32 %v81, %v289
    %v291 = vpop.f32.mrb[0].mxu0
    %v292 = vadd.f32 %v77, %v291
    %v293 = vpop.f32.mrb[0].mxu0
    %v294 = vadd.f32 %v81, %v293
    %295 = vmatprep.mubr.bf16.mxu0 0
    %296 = vmatmul.mubr.bf16.gmra.mrb[0].mxu0 %v132
    %v297 = vpop.f32.mrb[0].mxu0
    %v298 = vadd.f32 %v77, %v297
    %v299 = vpop.f32.mrb[0].mxu0
    %v300 = vadd.f32 %v81, %v299
    %v301 = vpop.f32.mrb[0].mxu0
    %v302 = vadd.f32 %v77, %v301
    %v303 = vpop.f32.mrb[0].mxu0
    %v304 = vadd.f32 %v81, %v303
    %305 = vmatprep.mubr.bf16.mxu0 0
    %306 = vmatmul.mubr.bf16.gmra.mrb[0].mxu0 %v135
    %v307 = vpop.f32.mrb[0].mxu0
    %v308 = vadd.f32 %v77, %v307
    %v309 = vpop.f32.mrb[0].mxu0
    %v310 = vadd.f32 %v81, %v309
    %v311 = vpop.f32.mrb[0].mxu0
    %v312 = vadd.f32 %v77, %v311
    %v313 = vpop.f32.mrb[0].mxu0
    %v314 = vadd.f32 %v81, %v313
    %315 = vmatprep.mubr.bf16.mxu0 0
    %316 = vmatmul.mubr.bf16.gmra.mrb[0].mxu0 %v138
    %v317 = vpop.f32.mrb[0].mxu0
    %v318 = vadd.f32 %v77, %v317
    %v319 = vpop.f32.mrb[0].mxu0
    %v320 = vadd.f32 %v81, %v319
    %v321 = vpop.f32.mrb[0].mxu0
    %v322 = vadd.f32 %v77, %v321
    %v323 = vpop.f32.mrb[0].mxu0
    %v324 = vadd.f32 %v81, %v323
    %325 = vmatprep.mubr.bf16.mxu0 0
    %326 = vmatmul.mubr.bf16.gmra.mrb[0].mxu0 %v141
    %v327 = vpop.f32.mrb[0].mxu0
    %v328 = vadd.f32 %v77, %v327
    %v329 = vpop.f32.mrb[0].mxu0
    %v330 = vadd.f32 %v81, %v329
    %v331 = vpop.f32.mrb[0].mxu0
    %v332 = vadd.f32 %v77, %v331
    %v333 = vpop.f32.mrb[0].mxu0
    %v334 = vadd.f32 %v81, %v333
    %335 = vdwg.mxu0
    %v336 = vmax.f32 %v178, 0.0
    %v337 = vmax.f32 %v180, 0.0
    %v338 = vmax.f32 %v182, 0.0
    %v339 = vmax.f32 %v184, 0.0
    %v340 = vmax.f32 %v188, 0.0
    %v341 = vmax.f32 %v190, 0.0
    %v342 = vmax.f32 %v192, 0.0
    %v343 = vmax.f32 %v194, 0.0
    %v344 = vmax.f32 %v198, 0.0
    %v345 = vmax.f32 %v200, 0.0
    %v346 = vmax.f32 %v202, 0.0
    %v347 = vmax.f32 %v204, 0.0
    %v348 = vmax.f32 %v208, 0.0
    %v349 = vmax.f32 %v210, 0.0
    %v350 = vmax.f32 %v212, 0.0
    %v351 = vmax.f32 %v214, 0.0
    %v352 = vmax.f32 %v218, 0.0
    %v353 = vmax.f32 %v220, 0.0
    %v354 = vmax.f32 %v222, 0.0
    %v355 = vmax.f32 %v224, 0.0
    %v356 = vmax.f32 %v228, 0.0
    %v357 = vmax.f32 %v230, 0.0
    %v358 = vmax.f32 %v232, 0.0
    %v359 = vmax.f32 %v234, 0.0
    %v360 = vmax.f32 %v238, 0.0
    %v361 = vmax.f32 %v240, 0.0
    %v362 = vmax.f32 %v242, 0.0
    %v363 = vmax.f32 %v244, 0.0
    %v364 = vmax.f32 %v248, 0.0
    %v365 = vmax.f32 %v250, 0.0
    %v366 = vmax.f32 %v252, 0.0
    %v367 = vmax.f32 %v254, 0.0
    %v368 = vmax.f32 %v258, 0.0
    %v369 = vmax.f32 %v260, 0.0
    %v370 = vmax.f32 %v262, 0.0
    %v371 = vmax.f32 %v264, 0.0
    %v372 = vmax.f32 %v268, 0.0
    %v373 = vmax.f32 %v270, 0.0
    %v374 = vmax.f32 %v272, 0.0
    %v375 = vmax.f32 %v274, 0.0
    %v376 = vmax.f32 %v278, 0.0
    %v377 = vmax.f32 %v280, 0.0
    %v378 = vmax.f32 %v282, 0.0
    %v379 = vmax.f32 %v284, 0.0
    %v380 = vmax.f32 %v288, 0.0
    %v381 = vmax.f32 %v290, 0.0
    %v382 = vmax.f32 %v292, 0.0
    %v383 = vmax.f32 %v294, 0.0
    %v384 = vmax.f32 %v298, 0.0
    %v385 = vmax.f32 %v300, 0.0
    %v386 = vmax.f32 %v302, 0.0
    %v387 = vmax.f32 %v304, 0.0
    %v388 = vmax.f32 %v308, 0.0
    %v389 = vmax.f32 %v310, 0.0
    %v390 = vmax.f32 %v312, 0.0
    %v391 = vmax.f32 %v314, 0.0
    %v392 = vmax.f32 %v318, 0.0
    %v393 = vmax.f32 %v320, 0.0
    %v394 = vmax.f32 %v322, 0.0
    %v395 = vmax.f32 %v324, 0.0
    %v396 = vmax.f32 %v328, 0.0
    %v397 = vmax.f32 %v330, 0.0
    %v398 = vmax.f32 %v332, 0.0
    %v399 = vmax.f32 %v334, 0.0
    %v400 = vpack.c.bf16 %v338, %v336
    %v401 = vpack.c.bf16 %v339, %v337
    %v402 = vpack.c.bf16 %v342, %v340
    %v403 = vpack.c.bf16 %v343, %v341
    %v404 = vpack.c.bf16 %v346, %v344
    %v405 = vpack.c.bf16 %v347, %v345
    %v406 = vpack.c.bf16 %v350, %v348
    %v407 = vpack.c.bf16 %v351, %v349
    %v408 = vpack.c.bf16 %v354, %v352
    %v409 = vpack.c.bf16 %v355, %v353
    %v410 = vpack.c.bf16 %v358, %v356
    %v411 = vpack.c.bf16 %v359, %v357
    %v412 = vpack.c.bf16 %v362, %v360
    %v413 = vpack.c.bf16 %v363, %v361
    %v414 = vpack.c.bf16 %v366, %v364
    %v415 = vpack.c.bf16 %v367, %v365
    %v416 = vpack.c.bf16 %v370, %v368
    %v417 = vpack.c.bf16 %v371, %v369
    %v418 = vpack.c.bf16 %v374, %v372
    %v419 = vpack.c.bf16 %v375, %v373
    %v420 = vpack.c.bf16 %v378, %v376
    %v421 = vpack.c.bf16 %v379, %v377
    %v422 = vpack.c.bf16 %v382, %v380
    %v423 = vpack.c.bf16 %v383, %v381
    %v424 = vpack.c.bf16 %v386, %v384
    %v425 = vpack.c.bf16 %v387, %v385
    %v426 = vpack.c.bf16 %v390, %v388
    %v427 = vpack.c.bf16 %v391, %v389
    %v428 = vpack.c.bf16 %v394, %v392
    %v429 = vpack.c.bf16 %v395, %v393
    %v430 = vpack.c.bf16 %v398, %v396
    %v431 = vpack.c.bf16 %v399, %v397
    %v432 = vld [vmem:[%s3] sm:$0xf]
    %v433 = vld [vmem:[%s3 + $0x4] sm:$0xf]
    %v434 = vld [vmem:[%s3 + $0x8] sm:$0xf]
    %v435 = vld [vmem:[%s3 + $0xc] sm:$0xf]
    %v436 = vld [vmem:[%s3 + $0x10] sm:$0xf]
    %v437 = vld [vmem:[%s3 + $0x14] sm:$0xf]
    %v438 = vld [vmem:[%s3 + $0x18] sm:$0xf]
    %v439 = vld [vmem:[%s3 + $0x1c] sm:$0xf]
    %v440 = vld [vmem:[%s3 + $0x20] sm:$0xf]
    %v441 = vld [vmem:[%s3 + $0x24] sm:$0xf]
    %v442 = vld [vmem:[%s3 + $0x28] sm:$0xf]
    %v443 = vld [vmem:[%s3 + $0x2c] sm:$0xf]
    %v444 = vld [vmem:[%s3 + $0x30] sm:$0xf]
    %v445 = vld [vmem:[%s3 + $0x34] sm:$0xf]
    %v446 = vld [vmem:[%s3 + $0x38] sm:$0xf]
    %v447 = vld [vmem:[%s3 + $0x3c] sm:$0xf]
    %v448 = vld [vmem:[%s3 + $0x40] sm:$0xf]
    %v449 = vld [vmem:[%s3 + $0x44] sm:$0xf]
    %v450 = vld [vmem:[%s3 + $0x48] sm:$0xf]
    %v451 = vld [vmem:[%s3 + $0x4c] sm:$0xf]
    %v452 = vld [vmem:[%s3 + $0x50] sm:$0xf]
    %v453 = vld [vmem:[%s3 + $0x54] sm:$0xf]
    %v454 = vld [vmem:[%s3 + $0x58] sm:$0xf]
    %v455 = vld [vmem:[%s3 + $0x5c] sm:$0xf]
    %v456 = vld [vmem:[%s3 + $0x60] sm:$0xf]
    %v457 = vld [vmem:[%s3 + $0x64] sm:$0xf]
    %v458 = vld [vmem:[%s3 + $0x68] sm:$0xf]
    %v459 = vld [vmem:[%s3 + $0x6c] sm:$0xf]
    %v460 = vld [vmem:[%s3 + $0x70] sm:$0xf]
    %v461 = vld [vmem:[%s3 + $0x74] sm:$0xf]
    %v462 = vld [vmem:[%s3 + $0x78] sm:$0xf]
    %v463 = vld [vmem:[%s3 + $0x7c] sm:$0xf]
    %v464 = vld [vmem:[%s4] sm:$0x1]
    %v466 = vlaneseq
    %v467 = vshrl.u32 %v466, 7
    %v468 = vsub.s32 0, %v467
    %v469 = vrot.slane %v464, %v468
    %v503 = vunpack.c.l.b16 %v432
    %v504 = vunpack.c.l.b16 %v433
    %v505 = vunpack.c.l.b16 %v434
    %v506 = vunpack.c.l.b16 %v435
    %v507 = vunpack.c.l.b16 %v436
    %v508 = vunpack.c.l.b16 %v437
    %v509 = vunpack.c.l.b16 %v438
    %v510 = vunpack.c.l.b16 %v439
    %v511 = vunpack.c.l.b16 %v440
    %v512 = vunpack.c.l.b16 %v441
    %v513 = vunpack.c.l.b16 %v442
    %v514 = vunpack.c.l.b16 %v443
    %v515 = vunpack.c.l.b16 %v444
    %v516 = vunpack.c.l.b16 %v445
    %v517 = vunpack.c.l.b16 %v446
    %v518 = vunpack.c.l.b16 %v447
    %v519 = vunpack.c.l.b16 %v448
    %v520 = vunpack.c.l.b16 %v449
    %v521 = vunpack.c.l.b16 %v450
    %v522 = vunpack.c.l.b16 %v451
    %v523 = vunpack.c.l.b16 %v452
    %v524 = vunpack.c.l.b16 %v453
    %v525 = vunpack.c.l.b16 %v454
    %v526 = vunpack.c.l.b16 %v455
    %v527 = vunpack.c.l.b16 %v456
    %v528 = vunpack.c.l.b16 %v457
    %v529 = vunpack.c.l.b16 %v458
    %v530 = vunpack.c.l.b16 %v459
    %v531 = vunpack.c.l.b16 %v460
    %v532 = vunpack.c.l.b16 %v461
    %v533 = vunpack.c.l.b16 %v462
    %v534 = vunpack.c.l.b16 %v463
    %v535 = vpack.c.b16 %v504, %v503
    %v536 = vpack.c.b16 %v506, %v505
    %v537 = vpack.c.b16 %v508, %v507
    %v538 = vpack.c.b16 %v510, %v509
    %v539 = vpack.c.b16 %v512, %v511
    %v540 = vpack.c.b16 %v514, %v513
    %v541 = vpack.c.b16 %v516, %v515
    %v542 = vpack.c.b16 %v518, %v517
    %v543 = vpack.c.b16 %v520, %v519
    %v544 = vpack.c.b16 %v522, %v521
    %v545 = vpack.c.b16 %v524, %v523
    %v546 = vpack.c.b16 %v526, %v525
    %v547 = vpack.c.b16 %v528, %v527
    %v548 = vpack.c.b16 %v530, %v529
    %v549 = vpack.c.b16 %v532, %v531
    %v550 = vpack.c.b16 %v534, %v533
    %567 = vmatprep.subr.bf16.mxu0 0
    %568 = vmatpush1.bf16.msra.mxu0 %v535
    %569 = vmatprep.subr.bf16.mxu0 0
    %570 = vmatpush1.bf16.msra.mxu0 %v536
    %571 = vmatprep.subr.bf16.mxu0 0
    %572 = vmatpush1.bf16.msra.mxu0 %v537
    %573 = vmatprep.subr.bf16.mxu0 0
    %574 = vmatpush1.bf16.msra.mxu0 %v538
    %575 = vmatprep.subr.bf16.mxu0 0
    %576 = vmatpush1.bf16.msra.mxu0 %v539
    %577 = vmatprep.subr.bf16.mxu0 0
    %578 = vmatpush1.bf16.msra.mxu0 %v540
    %579 = vmatprep.subr.bf16.mxu0 0
    %580 = vmatpush1.bf16.msra.mxu0 %v541
    %581 = vmatprep.subr.bf16.mxu0 0
    %582 = vmatpush1.bf16.msra.mxu0 %v542
    %583 = vmatprep.subr.bf16.mxu0 0
    %584 = vmatpush1.bf16.msra.mxu0 %v543
    %585 = vmatprep.subr.bf16.mxu0 0
    %586 = vmatpush1.bf16.msra.mxu0 %v544
    %587 = vmatprep.subr.bf16.mxu0 0
    %588 = vmatpush1.bf16.msra.mxu0 %v545
    %589 = vmatprep.subr.bf16.mxu0 0
    %590 = vmatpush1.bf16.msra.mxu0 %v546
    %591 = vmatprep.subr.bf16.mxu0 0
    %592 = vmatpush1.bf16.msra.mxu0 %v547
    %593 = vmatprep.subr.bf16.mxu0 0
    %594 = vmatpush1.bf16.msra.mxu0 %v548
    %595 = vmatprep.subr.bf16.mxu0 0
    %596 = vmatpush1.bf16.msra.mxu0 %v549
    %597 = vmatprep.subr.bf16.mxu0 0
    %598 = vmatpush1.bf16.msra.mxu0 %v550
    %599 = vmatprep.mubr.bf16.mxu0 %v401
    %600 = vmatmul.mubr.bf16.gmra.mrb[0].mxu0 %v400
    %v601 = vpop.f32.mrb[0].mxu0
    %v602 = vadd.f32 %v469, %v601
    %v603 = vpop.f32.mrb[0].mxu0
    %v604 = vpop.f32.mrb[0].mxu0
    %v605 = vadd.f32 %v469, %v604
    %v606 = vpop.f32.mrb[0].mxu0
    %607 = vmatprep.mubr.bf16.mxu0 %v403
    %608 = vmatmul.mubr.bf16.gmra.mrb[0].mxu0 %v402
    %v609 = vpop.f32.mrb[0].mxu0
    %v610 = vadd.f32 %v469, %v609
    %v611 = vpop.f32.mrb[0].mxu0
    %v612 = vpop.f32.mrb[0].mxu0
    %v613 = vadd.f32 %v469, %v612
    %v614 = vpop.f32.mrb[0].mxu0
    %615 = vmatprep.mubr.bf16.mxu0 %v405
    %616 = vmatmul.mubr.bf16.gmra.mrb[0].mxu0 %v404
    %v617 = vpop.f32.mrb[0].mxu0
    %v618 = vadd.f32 %v469, %v617
    %v619 = vpop.f32.mrb[0].mxu0
    %v620 = vpop.f32.mrb[0].mxu0
    %v621 = vadd.f32 %v469, %v620
    %v622 = vpop.f32.mrb[0].mxu0
    %623 = vmatprep.mubr.bf16.mxu0 %v407
    %624 = vmatmul.mubr.bf16.gmra.mrb[0].mxu0 %v406
    %v625 = vpop.f32.mrb[0].mxu0
    %v626 = vadd.f32 %v469, %v625
    %v627 = vpop.f32.mrb[0].mxu0
    %v628 = vpop.f32.mrb[0].mxu0
    %v629 = vadd.f32 %v469, %v628
    %v630 = vpop.f32.mrb[0].mxu0
    %631 = vmatprep.mubr.bf16.mxu0 %v409
    %632 = vmatmul.mubr.bf16.gmra.mrb[0].mxu0 %v408
    %v633 = vpop.f32.mrb[0].mxu0
    %v634 = vadd.f32 %v469, %v633
    %v635 = vpop.f32.mrb[0].mxu0
    %v636 = vpop.f32.mrb[0].mxu0
    %v637 = vadd.f32 %v469, %v636
    %v638 = vpop.f32.mrb[0].mxu0
    %639 = vmatprep.mubr.bf16.mxu0 %v411
    %640 = vmatmul.mubr.bf16.gmra.mrb[0].mxu0 %v410
    %v641 = vpop.f32.mrb[0].mxu0
    %v642 = vadd.f32 %v469, %v641
    %v643 = vpop.f32.mrb[0].mxu0
    %v644 = vpop.f32.mrb[0].mxu0
    %v645 = vadd.f32 %v469, %v644
    %v646 = vpop.f32.mrb[0].mxu0
    %647 = vmatprep.mubr.bf16.mxu0 %v413
    %648 = vmatmul.mubr.bf16.gmra.mrb[0].mxu0 %v412
    %v649 = vpop.f32.mrb[0].mxu0
    %v650 = vadd.f32 %v469, %v649
    %v651 = vpop.f32.mrb[0].mxu0
    %v652 = vpop.f32.mrb[0].mxu0
    %v653 = vadd.f32 %v469, %v652
    %v654 = vpop.f32.mrb[0].mxu0
    %655 = vmatprep.mubr.bf16.mxu0 %v415
    %656 = vmatmul.mubr.bf16.gmra.mrb[0].mxu0 %v414
    %v657 = vpop.f32.mrb[0].mxu0
    %v658 = vadd.f32 %v469, %v657
    %v659 = vpop.f32.mrb[0].mxu0
    %v660 = vpop.f32.mrb[0].mxu0
    %v661 = vadd.f32 %v469, %v660
    %v662 = vpop.f32.mrb[0].mxu0
    %663 = vmatprep.mubr.bf16.mxu0 %v417
    %664 = vmatmul.mubr.bf16.gmra.mrb[0].mxu0 %v416
    %v665 = vpop.f32.mrb[0].mxu0
    %v666 = vadd.f32 %v469, %v665
    %v667 = vpop.f32.mrb[0].mxu0
    %v668 = vpop.f32.mrb[0].mxu0
    %v669 = vadd.f32 %v469, %v668
    %v670 = vpop.f32.mrb[0].mxu0
    %671 = vmatprep.mubr.bf16.mxu0 %v419
    %672 = vmatmul.mubr.bf16.gmra.mrb[0].mxu0 %v418
    %v673 = vpop.f32.mrb[0].mxu0
    %v674 = vadd.f32 %v469, %v673
    %v675 = vpop.f32.mrb[0].mxu0
    %v676 = vpop.f32.mrb[0].mxu0
    %v677 = vadd.f32 %v469, %v676
    %v678 = vpop.f32.mrb[0].mxu0
    %679 = vmatprep.mubr.bf16.mxu0 %v421
    %680 = vmatmul.mubr.bf16.gmra.mrb[0].mxu0 %v420
    %v681 = vpop.f32.mrb[0].mxu0
    %v682 = vadd.f32 %v469, %v681
    %v683 = vpop.f32.mrb[0].mxu0
    %v684 = vpop.f32.mrb[0].mxu0
    %v685 = vadd.f32 %v469, %v684
    %v686 = vpop.f32.mrb[0].mxu0
    %687 = vmatprep.mubr.bf16.mxu0 %v423
    %688 = vmatmul.mubr.bf16.gmra.mrb[0].mxu0 %v422
    %v689 = vpop.f32.mrb[0].mxu0
    %v690 = vadd.f32 %v469, %v689
    %v691 = vpop.f32.mrb[0].mxu0
    %v692 = vpop.f32.mrb[0].mxu0
    %v693 = vadd.f32 %v469, %v692
    %v694 = vpop.f32.mrb[0].mxu0
    %695 = vmatprep.mubr.bf16.mxu0 %v425
    %696 = vmatmul.mubr.bf16.gmra.mrb[0].mxu0 %v424
    %v697 = vpop.f32.mrb[0].mxu0
    %v698 = vadd.f32 %v469, %v697
    %v699 = vpop.f32.mrb[0].mxu0
    %v700 = vpop.f32.mrb[0].mxu0
    %v701 = vadd.f32 %v469, %v700
    %v702 = vpop.f32.mrb[0].mxu0
    %703 = vmatprep.mubr.bf16.mxu0 %v427
    %704 = vmatmul.mubr.bf16.gmra.mrb[0].mxu0 %v426
    %v705 = vpop.f32.mrb[0].mxu0
    %v706 = vadd.f32 %v469, %v705
    %v707 = vpop.f32.mrb[0].mxu0
    %v708 = vpop.f32.mrb[0].mxu0
    %v709 = vadd.f32 %v469, %v708
    %v710 = vpop.f32.mrb[0].mxu0
    %711 = vmatprep.mubr.bf16.mxu0 %v429
    %712 = vmatmul.mubr.bf16.gmra.mrb[0].mxu0 %v428
    %v713 = vpop.f32.mrb[0].mxu0
    %v714 = vadd.f32 %v469, %v713
    %v715 = vpop.f32.mrb[0].mxu0
    %v716 = vpop.f32.mrb[0].mxu0
    %v717 = vadd.f32 %v469, %v716
    %v718 = vpop.f32.mrb[0].mxu0
    %719 = vmatprep.mubr.bf16.mxu0 %v431
    %720 = vmatmul.mubr.bf16.gmra.mrb[0].mxu0 %v430
    %v721 = vpop.f32.mrb[0].mxu0
    %v722 = vadd.f32 %v469, %v721
    %v723 = vpop.f32.mrb[0].mxu0
    %v724 = vpop.f32.mrb[0].mxu0
    %v725 = vadd.f32 %v469, %v724
    %v726 = vpop.f32.mrb[0].mxu0
    %727 = vdwg.mxu0
    %v728 = vlaneseq
    %v729 = vand.u32 %v728, 127
    %vm730 = vcmp.lt.s32.totalorder %v729, 4
    %vm731 = vcmp.eq.s32.totalorder %v729, 4
    %v732 = vsel %vm730, %v602, -inf
    %v733 = vsel %vm730, %v605, -inf
    %v734 = vsel %vm730, %v610, -inf
    %v735 = vsel %vm730, %v613, -inf
    %v736 = vsel %vm730, %v618, -inf
    %v737 = vsel %vm730, %v621, -inf
    %v738 = vsel %vm730, %v626, -inf
    %v739 = vsel %vm730, %v629, -inf
    %v740 = vsel %vm730, %v634, -inf
    %v741 = vsel %vm730, %v637, -inf
    %v742 = vsel %vm730, %v642, -inf
    %v743 = vsel %vm730, %v645, -inf
    %v744 = vsel %vm730, %v650, -inf
    %v745 = vsel %vm730, %v653, -inf
    %v746 = vsel %vm730, %v658, -inf
    %v747 = vsel %vm730, %v661, -inf
    %v748 = vsel %vm730, %v666, -inf
    %v749 = vsel %vm730, %v669, -inf
    %v750 = vsel %vm730, %v674, -inf
    %v751 = vsel %vm730, %v677, -inf
    %v752 = vsel %vm730, %v682, -inf
    %v753 = vsel %vm730, %v685, -inf
    %v754 = vsel %vm730, %v690, -inf
    %v755 = vsel %vm730, %v693, -inf
    %v756 = vsel %vm730, %v698, -inf
    %v757 = vsel %vm730, %v701, -inf
    %v758 = vsel %vm730, %v706, -inf
    %v759 = vsel %vm730, %v709, -inf
    %v760 = vsel %vm730, %v714, -inf
    %v761 = vsel %vm730, %v717, -inf
    %v762 = vsel %vm730, %v722, -inf
    %v763 = vsel %vm730, %v725, -inf
    %764 = vmax.xlane.f32.xlu0 %v732
    %v765 = vpop.xlane.xlu0 %764
    %766 = vmax.xlane.f32.xlu0 %v733
    %v767 = vpop.xlane.xlu0 %766
    %768 = vmax.xlane.f32.xlu0 %v734
    %v769 = vpop.xlane.xlu0 %768
    %770 = vmax.xlane.f32.xlu0 %v735
    %v771 = vpop.xlane.xlu0 %770
    %772 = vmax.xlane.f32.xlu0 %v736
    %v773 = vpop.xlane.xlu0 %772
    %774 = vmax.xlane.f32.xlu0 %v737
    %v775 = vpop.xlane.xlu0 %774
    %776 = vmax.xlane.f32.xlu0 %v738
    %v777 = vpop.xlane.xlu0 %776
    %778 = vmax.xlane.f32.xlu0 %v739
    %v779 = vpop.xlane.xlu0 %778
    %780 = vmax.xlane.f32.xlu0 %v740
    %v781 = vpop.xlane.xlu0 %780
    %782 = vmax.xlane.f32.xlu0 %v741
    %v783 = vpop.xlane.xlu0 %782
    %784 = vmax.xlane.f32.xlu0 %v742
    %v785 = vpop.xlane.xlu0 %784
    %786 = vmax.xlane.f32.xlu0 %v743
    %v787 = vpop.xlane.xlu0 %786
    %788 = vmax.xlane.f32.xlu0 %v744
    %v789 = vpop.xlane.xlu0 %788
    %790 = vmax.xlane.f32.xlu0 %v745
    %v791 = vpop.xlane.xlu0 %790
    %792 = vmax.xlane.f32.xlu0 %v746
    %v793 = vpop.xlane.xlu0 %792
    %794 = vmax.xlane.f32.xlu0 %v747
    %v795 = vpop.xlane.xlu0 %794
    %796 = vmax.xlane.f32.xlu0 %v748
    %v797 = vpop.xlane.xlu0 %796
    %798 = vmax.xlane.f32.xlu0 %v749
    %v799 = vpop.xlane.xlu0 %798
    %800 = vmax.xlane.f32.xlu0 %v750
    %v801 = vpop.xlane.xlu0 %800
    %802 = vmax.xlane.f32.xlu0 %v751
    %v803 = vpop.xlane.xlu0 %802
    %804 = vmax.xlane.f32.xlu0 %v752
    %v805 = vpop.xlane.xlu0 %804
    %806 = vmax.xlane.f32.xlu0 %v753
    %v807 = vpop.xlane.xlu0 %806
    %808 = vmax.xlane.f32.xlu0 %v754
    %v809 = vpop.xlane.xlu0 %808
    %810 = vmax.xlane.f32.xlu0 %v755
    %v811 = vpop.xlane.xlu0 %810
    %812 = vmax.xlane.f32.xlu0 %v756
    %v813 = vpop.xlane.xlu0 %812
    %814 = vmax.xlane.f32.xlu0 %v757
    %v815 = vpop.xlane.xlu0 %814
    %816 = vmax.xlane.f32.xlu0 %v758
    %v817 = vpop.xlane.xlu0 %816
    %818 = vmax.xlane.f32.xlu0 %v759
    %v819 = vpop.xlane.xlu0 %818
    %820 = vmax.xlane.f32.xlu0 %v760
    %v821 = vpop.xlane.xlu0 %820
    %822 = vmax.xlane.f32.xlu0 %v761
    %v823 = vpop.xlane.xlu0 %822
    %824 = vmax.xlane.f32.xlu0 %v762
    %v825 = vpop.xlane.xlu0 %824
    %826 = vmax.xlane.f32.xlu0 %v763
    %v827 = vpop.xlane.xlu0 %826
    %v828 = vsub.f32 %v732, %v765
    %v829 = vsub.f32 %v733, %v767
    %v830 = vsub.f32 %v734, %v769
    %v831 = vsub.f32 %v735, %v771
    %v832 = vsub.f32 %v736, %v773
    %v833 = vsub.f32 %v737, %v775
    %v834 = vsub.f32 %v738, %v777
    %v835 = vsub.f32 %v739, %v779
    %v836 = vsub.f32 %v740, %v781
    %v837 = vsub.f32 %v741, %v783
    %v838 = vsub.f32 %v742, %v785
    %v839 = vsub.f32 %v743, %v787
    %v840 = vsub.f32 %v744, %v789
    %v841 = vsub.f32 %v745, %v791
    %v842 = vsub.f32 %v746, %v793
    %v843 = vsub.f32 %v747, %v795
    %v844 = vsub.f32 %v748, %v797
    %v845 = vsub.f32 %v749, %v799
    %v846 = vsub.f32 %v750, %v801
    %v847 = vsub.f32 %v751, %v803
    %v848 = vsub.f32 %v752, %v805
    %v849 = vsub.f32 %v753, %v807
    %v850 = vsub.f32 %v754, %v809
    %v851 = vsub.f32 %v755, %v811
    %v852 = vsub.f32 %v756, %v813
    %v853 = vsub.f32 %v757, %v815
    %v854 = vsub.f32 %v758, %v817
    %v855 = vsub.f32 %v759, %v819
    %v856 = vsub.f32 %v760, %v821
    %v857 = vsub.f32 %v761, %v823
    %v858 = vsub.f32 %v762, %v825
    %v859 = vsub.f32 %v763, %v827
    %v860 = vmul.f32 %v828, 1.442695
    %v861 = vpow.pop %v860
    %v862 = vmul.f32 %v829, 1.442695
    %v863 = vpow.pop %v862
    %v864 = vmul.f32 %v830, 1.442695
    %v865 = vpow.pop %v864
    %v866 = vmul.f32 %v831, 1.442695
    %v867 = vpow.pop %v866
    %v868 = vmul.f32 %v832, 1.442695
    %v869 = vpow.pop %v868
    %v870 = vmul.f32 %v833, 1.442695
    %v871 = vpow.pop %v870
    %v872 = vmul.f32 %v834, 1.442695
    %v873 = vpow.pop %v872
    %v874 = vmul.f32 %v835, 1.442695
    %v875 = vpow.pop %v874
    %v876 = vmul.f32 %v836, 1.442695
    %v877 = vpow.pop %v876
    %v878 = vmul.f32 %v837, 1.442695
    %v879 = vpow.pop %v878
    %v880 = vmul.f32 %v838, 1.442695
    %v881 = vpow.pop %v880
    %v882 = vmul.f32 %v839, 1.442695
    %v883 = vpow.pop %v882
    %v884 = vmul.f32 %v840, 1.442695
    %v885 = vpow.pop %v884
    %v886 = vmul.f32 %v841, 1.442695
    %v887 = vpow.pop %v886
    %v888 = vmul.f32 %v842, 1.442695
    %v889 = vpow.pop %v888
    %v890 = vmul.f32 %v843, 1.442695
    %v891 = vpow.pop %v890
    %v892 = vmul.f32 %v844, 1.442695
    %v893 = vpow.pop %v892
    %v894 = vmul.f32 %v845, 1.442695
    %v895 = vpow.pop %v894
    %v896 = vmul.f32 %v846, 1.442695
    %v897 = vpow.pop %v896
    %v898 = vmul.f32 %v847, 1.442695
    %v899 = vpow.pop %v898
    %v900 = vmul.f32 %v848, 1.442695
    %v901 = vpow.pop %v900
    %v902 = vmul.f32 %v849, 1.442695
    %v903 = vpow.pop %v902
    %v904 = vmul.f32 %v850, 1.442695
    %v905 = vpow.pop %v904
    %v906 = vmul.f32 %v851, 1.442695
    %v907 = vpow.pop %v906
    %v908 = vmul.f32 %v852, 1.442695
    %v909 = vpow.pop %v908
    %v910 = vmul.f32 %v853, 1.442695
    %v911 = vpow.pop %v910
    %v912 = vmul.f32 %v854, 1.442695
    %v913 = vpow.pop %v912
    %v914 = vmul.f32 %v855, 1.442695
    %v915 = vpow.pop %v914
    %v916 = vmul.f32 %v856, 1.442695
    %v917 = vpow.pop %v916
    %v918 = vmul.f32 %v857, 1.442695
    %v919 = vpow.pop %v918
    %v920 = vmul.f32 %v858, 1.442695
    %v921 = vpow.pop %v920
    %v922 = vmul.f32 %v859, 1.442695
    %v923 = vpow.pop %v922
    %924 = vadd.xlane.f32.xlu0 %v861
    %v925 = vpop.xlane.xlu0 %924
    %926 = vadd.xlane.f32.xlu0 %v863
    %v927 = vpop.xlane.xlu0 %926
    %928 = vadd.xlane.f32.xlu0 %v865
    %v929 = vpop.xlane.xlu0 %928
    %930 = vadd.xlane.f32.xlu0 %v867
    %v931 = vpop.xlane.xlu0 %930
    %932 = vadd.xlane.f32.xlu0 %v869
    %v933 = vpop.xlane.xlu0 %932
    %934 = vadd.xlane.f32.xlu0 %v871
    %v935 = vpop.xlane.xlu0 %934
    %936 = vadd.xlane.f32.xlu0 %v873
    %v937 = vpop.xlane.xlu0 %936
    %938 = vadd.xlane.f32.xlu0 %v875
    %v939 = vpop.xlane.xlu0 %938
    %940 = vadd.xlane.f32.xlu0 %v877
    %v941 = vpop.xlane.xlu0 %940
    %942 = vadd.xlane.f32.xlu0 %v879
    %v943 = vpop.xlane.xlu0 %942
    %944 = vadd.xlane.f32.xlu0 %v881
    %v945 = vpop.xlane.xlu0 %944
    %946 = vadd.xlane.f32.xlu0 %v883
    %v947 = vpop.xlane.xlu0 %946
    %948 = vadd.xlane.f32.xlu0 %v885
    %v949 = vpop.xlane.xlu0 %948
    %950 = vadd.xlane.f32.xlu0 %v887
    %v951 = vpop.xlane.xlu0 %950
    %952 = vadd.xlane.f32.xlu0 %v889
    %v953 = vpop.xlane.xlu0 %952
    %954 = vadd.xlane.f32.xlu0 %v891
    %v955 = vpop.xlane.xlu0 %954
    %956 = vadd.xlane.f32.xlu0 %v893
    %v957 = vpop.xlane.xlu0 %956
    %958 = vadd.xlane.f32.xlu0 %v895
    %v959 = vpop.xlane.xlu0 %958
    %960 = vadd.xlane.f32.xlu0 %v897
    %v961 = vpop.xlane.xlu0 %960
    %962 = vadd.xlane.f32.xlu0 %v899
    %v963 = vpop.xlane.xlu0 %962
    %964 = vadd.xlane.f32.xlu0 %v901
    %v965 = vpop.xlane.xlu0 %964
    %966 = vadd.xlane.f32.xlu0 %v903
    %v967 = vpop.xlane.xlu0 %966
    %968 = vadd.xlane.f32.xlu0 %v905
    %v969 = vpop.xlane.xlu0 %968
    %970 = vadd.xlane.f32.xlu0 %v907
    %v971 = vpop.xlane.xlu0 %970
    %972 = vadd.xlane.f32.xlu0 %v909
    %v973 = vpop.xlane.xlu0 %972
    %974 = vadd.xlane.f32.xlu0 %v911
    %v975 = vpop.xlane.xlu0 %974
    %976 = vadd.xlane.f32.xlu0 %v913
    %v977 = vpop.xlane.xlu0 %976
    %978 = vadd.xlane.f32.xlu0 %v915
    %v979 = vpop.xlane.xlu0 %978
    %980 = vadd.xlane.f32.xlu0 %v917
    %v981 = vpop.xlane.xlu0 %980
    %982 = vadd.xlane.f32.xlu0 %v919
    %v983 = vpop.xlane.xlu0 %982
    %984 = vadd.xlane.f32.xlu0 %v921
    %v985 = vpop.xlane.xlu0 %984
    %986 = vadd.xlane.f32.xlu0 %v923
    %v987 = vpop.xlane.xlu0 %986
    %v988 = vrcp.pop %v925
    %v989 = vmul.f32 %v861, %v988
    %v990 = vrcp.pop %v927
    %v991 = vmul.f32 %v863, %v990
    %v992 = vrcp.pop %v929
    %v993 = vmul.f32 %v865, %v992
    %v994 = vrcp.pop %v931
    %v995 = vmul.f32 %v867, %v994
    %v996 = vrcp.pop %v933
    %v997 = vmul.f32 %v869, %v996
    %v998 = vrcp.pop %v935
    %v999 = vmul.f32 %v871, %v998
    %v1000 = vrcp.pop %v937
    %v1001 = vmul.f32 %v873, %v1000
    %v1002 = vrcp.pop %v939
    %v1003 = vmul.f32 %v875, %v1002
    %v1004 = vrcp.pop %v941
    %v1005 = vmul.f32 %v877, %v1004
    %v1006 = vrcp.pop %v943
    %v1007 = vmul.f32 %v879, %v1006
    %v1008 = vrcp.pop %v945
    %v1009 = vmul.f32 %v881, %v1008
    %v1010 = vrcp.pop %v947
    %v1011 = vmul.f32 %v883, %v1010
    %v1012 = vrcp.pop %v949
    %v1013 = vmul.f32 %v885, %v1012
    %v1014 = vrcp.pop %v951
    %v1015 = vmul.f32 %v887, %v1014
    %v1016 = vrcp.pop %v953
    %v1017 = vmul.f32 %v889, %v1016
    %v1018 = vrcp.pop %v955
    %v1019 = vmul.f32 %v891, %v1018
    %v1020 = vrcp.pop %v957
    %v1021 = vmul.f32 %v893, %v1020
    %v1022 = vrcp.pop %v959
    %v1023 = vmul.f32 %v895, %v1022
    %v1024 = vrcp.pop %v961
    %v1025 = vmul.f32 %v897, %v1024
    %v1026 = vrcp.pop %v963
    %v1027 = vmul.f32 %v899, %v1026
    %v1028 = vrcp.pop %v965
    %v1029 = vmul.f32 %v901, %v1028
    %v1030 = vrcp.pop %v967
    %v1031 = vmul.f32 %v903, %v1030
    %v1032 = vrcp.pop %v969
    %v1033 = vmul.f32 %v905, %v1032
    %v1034 = vrcp.pop %v971
    %v1035 = vmul.f32 %v907, %v1034
    %v1036 = vrcp.pop %v973
    %v1037 = vmul.f32 %v909, %v1036
    %v1038 = vrcp.pop %v975
    %v1039 = vmul.f32 %v911, %v1038
    %v1040 = vrcp.pop %v977
    %v1041 = vmul.f32 %v913, %v1040
    %v1042 = vrcp.pop %v979
    %v1043 = vmul.f32 %v915, %v1042
    %v1044 = vrcp.pop %v981
    %v1045 = vmul.f32 %v917, %v1044
    %v1046 = vrcp.pop %v983
    %v1047 = vmul.f32 %v919, %v1046
    %v1048 = vrcp.pop %v985
    %v1049 = vmul.f32 %v921, %v1048
    %v1050 = vrcp.pop %v987
    %v1051 = vmul.f32 %v923, %v1050
    %v1052 = vsel %vm731, %v602, 0.0
    %v1053 = vsel %vm731, %v605, 0.0
    %v1054 = vsel %vm731, %v610, 0.0
    %v1055 = vsel %vm731, %v613, 0.0
    %v1056 = vsel %vm731, %v618, 0.0
    %v1057 = vsel %vm731, %v621, 0.0
    %v1058 = vsel %vm731, %v626, 0.0
    %v1059 = vsel %vm731, %v629, 0.0
    %v1060 = vsel %vm731, %v634, 0.0
    %v1061 = vsel %vm731, %v637, 0.0
    %v1062 = vsel %vm731, %v642, 0.0
    %v1063 = vsel %vm731, %v645, 0.0
    %v1064 = vsel %vm731, %v650, 0.0
    %v1065 = vsel %vm731, %v653, 0.0
    %v1066 = vsel %vm731, %v658, 0.0
    %v1067 = vsel %vm731, %v661, 0.0
    %v1068 = vsel %vm731, %v666, 0.0
    %v1069 = vsel %vm731, %v669, 0.0
    %v1070 = vsel %vm731, %v674, 0.0
    %v1071 = vsel %vm731, %v677, 0.0
    %v1072 = vsel %vm731, %v682, 0.0
    %v1073 = vsel %vm731, %v685, 0.0
    %v1074 = vsel %vm731, %v690, 0.0
    %v1075 = vsel %vm731, %v693, 0.0
    %v1076 = vsel %vm731, %v698, 0.0
    %v1077 = vsel %vm731, %v701, 0.0
    %v1078 = vsel %vm731, %v706, 0.0
    %v1079 = vsel %vm731, %v709, 0.0
    %v1080 = vsel %vm731, %v714, 0.0
    %v1081 = vsel %vm731, %v717, 0.0
    %v1082 = vsel %vm731, %v722, 0.0
    %v1083 = vsel %vm731, %v725, 0.0
    %v1084 = vadd.f32 %v989, %v1052
    %v1085 = vadd.f32 %v991, %v1053
    %v1086 = vadd.f32 %v993, %v1054
    %v1087 = vadd.f32 %v995, %v1055
    %v1088 = vadd.f32 %v997, %v1056
    %v1089 = vadd.f32 %v999, %v1057
    %v1090 = vadd.f32 %v1001, %v1058
    %v1091 = vadd.f32 %v1003, %v1059
    %v1092 = vadd.f32 %v1005, %v1060
    %v1093 = vadd.f32 %v1007, %v1061
    %v1094 = vadd.f32 %v1009, %v1062
    %v1095 = vadd.f32 %v1011, %v1063
    %v1096 = vadd.f32 %v1013, %v1064
    %v1097 = vadd.f32 %v1015, %v1065
    %v1098 = vadd.f32 %v1017, %v1066
    %v1099 = vadd.f32 %v1019, %v1067
    %v1100 = vadd.f32 %v1021, %v1068
    %v1101 = vadd.f32 %v1023, %v1069
    %v1102 = vadd.f32 %v1025, %v1070
    %v1103 = vadd.f32 %v1027, %v1071
    %v1104 = vadd.f32 %v1029, %v1072
    %v1105 = vadd.f32 %v1031, %v1073
    %v1106 = vadd.f32 %v1033, %v1074
    %v1107 = vadd.f32 %v1035, %v1075
    %v1108 = vadd.f32 %v1037, %v1076
    %v1109 = vadd.f32 %v1039, %v1077
    %v1110 = vadd.f32 %v1041, %v1078
    %v1111 = vadd.f32 %v1043, %v1079
    %v1112 = vadd.f32 %v1045, %v1080
    %v1113 = vadd.f32 %v1047, %v1081
    %v1114 = vadd.f32 %v1049, %v1082
    %v1115 = vadd.f32 %v1051, %v1083
    %v1116 = vpack.c.bf16 %v1085, %v1084
    %v1117 = vpack.c.bf16 %v1087, %v1086
    %v1118 = vpack.c.bf16 %v1089, %v1088
    %v1119 = vpack.c.bf16 %v1091, %v1090
    %v1120 = vpack.c.bf16 %v1093, %v1092
    %v1121 = vpack.c.bf16 %v1095, %v1094
    %v1122 = vpack.c.bf16 %v1097, %v1096
    %v1123 = vpack.c.bf16 %v1099, %v1098
    %v1124 = vpack.c.bf16 %v1101, %v1100
    %v1125 = vpack.c.bf16 %v1103, %v1102
    %v1126 = vpack.c.bf16 %v1105, %v1104
    %v1127 = vpack.c.bf16 %v1107, %v1106
    %v1128 = vpack.c.bf16 %v1109, %v1108
    %v1129 = vpack.c.bf16 %v1111, %v1110
    %v1130 = vpack.c.bf16 %v1113, %v1112
    %v1131 = vpack.c.bf16 %v1115, %v1114
    %v1148 = vunpack.c.l.b16 %v1116
    %v1149 = vunpack.c.h.b16 %v1116
    %v1150 = vunpack.c.l.b16 %v1117
    %v1151 = vunpack.c.h.b16 %v1117
    %v1152 = vunpack.c.l.b16 %v1118
    %v1153 = vunpack.c.h.b16 %v1118
    %v1154 = vunpack.c.l.b16 %v1119
    %v1155 = vunpack.c.h.b16 %v1119
    %v1156 = vunpack.c.l.b16 %v1120
    %v1157 = vunpack.c.h.b16 %v1120
    %v1158 = vunpack.c.l.b16 %v1121
    %v1159 = vunpack.c.h.b16 %v1121
    %v1160 = vunpack.c.l.b16 %v1122
    %v1161 = vunpack.c.h.b16 %v1122
    %v1162 = vunpack.c.l.b16 %v1123
    %v1163 = vunpack.c.h.b16 %v1123
    %v1164 = vunpack.c.l.b16 %v1124
    %v1165 = vunpack.c.h.b16 %v1124
    %v1166 = vunpack.c.l.b16 %v1125
    %v1167 = vunpack.c.h.b16 %v1125
    %v1168 = vunpack.c.l.b16 %v1126
    %v1169 = vunpack.c.h.b16 %v1126
    %v1170 = vunpack.c.l.b16 %v1127
    %v1171 = vunpack.c.h.b16 %v1127
    %v1172 = vunpack.c.l.b16 %v1128
    %v1173 = vunpack.c.h.b16 %v1128
    %v1174 = vunpack.c.l.b16 %v1129
    %v1175 = vunpack.c.h.b16 %v1129
    %v1176 = vunpack.c.l.b16 %v1130
    %v1177 = vunpack.c.h.b16 %v1130
    %v1178 = vunpack.c.l.b16 %v1131
    %v1179 = vunpack.c.h.b16 %v1131
    %v1180 = vpack.c.b16 %v1148, %v1148
    %v1181 = vpack.c.b16 %v1149, %v1149
    %v1182 = vpack.c.b16 %v1150, %v1150
    %v1183 = vpack.c.b16 %v1151, %v1151
    %v1184 = vpack.c.b16 %v1152, %v1152
    %v1185 = vpack.c.b16 %v1153, %v1153
    %v1186 = vpack.c.b16 %v1154, %v1154
    %v1187 = vpack.c.b16 %v1155, %v1155
    %v1188 = vpack.c.b16 %v1156, %v1156
    %v1189 = vpack.c.b16 %v1157, %v1157
    %v1190 = vpack.c.b16 %v1158, %v1158
    %v1191 = vpack.c.b16 %v1159, %v1159
    %v1192 = vpack.c.b16 %v1160, %v1160
    %v1193 = vpack.c.b16 %v1161, %v1161
    %v1194 = vpack.c.b16 %v1162, %v1162
    %v1195 = vpack.c.b16 %v1163, %v1163
    %v1196 = vpack.c.b16 %v1164, %v1164
    %v1197 = vpack.c.b16 %v1165, %v1165
    %v1198 = vpack.c.b16 %v1166, %v1166
    %v1199 = vpack.c.b16 %v1167, %v1167
    %v1200 = vpack.c.b16 %v1168, %v1168
    %v1201 = vpack.c.b16 %v1169, %v1169
    %v1202 = vpack.c.b16 %v1170, %v1170
    %v1203 = vpack.c.b16 %v1171, %v1171
    %v1204 = vpack.c.b16 %v1172, %v1172
    %v1205 = vpack.c.b16 %v1173, %v1173
    %v1206 = vpack.c.b16 %v1174, %v1174
    %v1207 = vpack.c.b16 %v1175, %v1175
    %v1208 = vpack.c.b16 %v1176, %v1176
    %v1209 = vpack.c.b16 %v1177, %v1177
    %v1210 = vpack.c.b16 %v1178, %v1178
    %v1211 = vpack.c.b16 %v1179, %v1179
    %1244 = vst [vmem:[#allocation2] sm:$0xf] %v1180
    %1245 = vst [vmem:[#allocation2 + $0x4] sm:$0xf] %v1181
    %1246 = vst [vmem:[#allocation2 + $0x8] sm:$0xf] %v1182
    %1247 = vst [vmem:[#allocation2 + $0xc] sm:$0xf] %v1183
    %1248 = vst [vmem:[#allocation2 + $0x10] sm:$0xf] %v1184
    %1249 = vst [vmem:[#allocation2 + $0x14] sm:$0xf] %v1185
    %1250 = vst [vmem:[#allocation2 + $0x18] sm:$0xf] %v1186
    %1251 = vst [vmem:[#allocation2 + $0x1c] sm:$0xf] %v1187
    %1252 = vst [vmem:[#allocation2 + $0x20] sm:$0xf] %v1188
    %1253 = vst [vmem:[#allocation2 + $0x24] sm:$0xf] %v1189
    %1254 = vst [vmem:[#allocation2 + $0x28] sm:$0xf] %v1190
    %1255 = vst [vmem:[#allocation2 + $0x2c] sm:$0xf] %v1191
    %1256 = vst [vmem:[#allocation2 + $0x30] sm:$0xf] %v1192
    %1257 = vst [vmem:[#allocation2 + $0x34] sm:$0xf] %v1193
    %1258 = vst [vmem:[#allocation2 + $0x38] sm:$0xf] %v1194
    %1259 = vst [vmem:[#allocation2 + $0x3c] sm:$0xf] %v1195
    %1260 = vst [vmem:[#allocation2 + $0x40] sm:$0xf] %v1196
    %1261 = vst [vmem:[#allocation2 + $0x44] sm:$0xf] %v1197
    %1262 = vst [vmem:[#allocation2 + $0x48] sm:$0xf] %v1198
    %1263 = vst [vmem:[#allocation2 + $0x4c] sm:$0xf] %v1199
    %1264 = vst [vmem:[#allocation2 + $0x50] sm:$0xf] %v1200
    %1265 = vst [vmem:[#allocation2 + $0x54] sm:$0xf] %v1201
    %1266 = vst [vmem:[#allocation2 + $0x58] sm:$0xf] %v1202
    %1267 = vst [vmem:[#allocation2 + $0x5c] sm:$0xf] %v1203
    %1268 = vst [vmem:[#allocation2 + $0x60] sm:$0xf] %v1204
    %1269 = vst [vmem:[#allocation2 + $0x64] sm:$0xf] %v1205
    %1270 = vst [vmem:[#allocation2 + $0x68] sm:$0xf] %v1206
    %1271 = vst [vmem:[#allocation2 + $0x6c] sm:$0xf] %v1207
    %1272 = vst [vmem:[#allocation2 + $0x70] sm:$0xf] %v1208
    %1273 = vst [vmem:[#allocation2 + $0x74] sm:$0xf] %v1209
    %1274 = vst [vmem:[#allocation2 + $0x78] sm:$0xf] %v1210
    %1275 = vst [vmem:[#allocation2 + $0x7c] sm:$0xf] %v1211
    // Predicated region
    $region22: #{tpu_custom_call.1} parent=1 // pred_check
      _
    $region23: #{tpu_custom_call.1} parent=1 // pred_check_branch
      %1277 = sbr.rel (0) target = $region25
    $region24: #{tpu_custom_call.1} parent=1 // pred_region
      %s1279 = ssub.s32 2048, 2048
      %1280 = vsyncadd [#allocation3], %s1279
      %s1281 = sshll.u32 [#allocation2], 4
      %s1282 = int_to_ptr.vmem [resolvable:$true] %s1281
      %1287 = dma.vmem_to_hbm [thread:$0]  %s1282, 2048, %s5, [#allocation3], 64, 64, 4
    $region25: #{tpu_custom_call.1} parent=1 // pred_fallthru
      _
    // Predicated region
    $region26: #{tpu_custom_call.1} parent=1 // pred_check
      _
    $region27: #{tpu_custom_call.1} parent=1 // pred_check_branch
      %1289 = sbr.rel (0) target = $region29
    $region28: #{tpu_custom_call.1} parent=1 // pred_region
      %1290 = dma.done [#allocation3], 2048
    $region29: #{tpu_custom_call.1} parent=1 // pred_fallthru
      _
    %1291 = vsyncpa [#allocation3], 1

</llo_original>
